<compile_context>
chip_gen: v6e
topology: v6e:2x2x1
jax: 0.10.0
libtpu: 0.0.40
codegen_flags: <defaults>
</compile_context>

<pallas_src>
import jax
import jax.numpy as jnp
from jax.experimental import pallas as pl
from jax.experimental.pallas import tpu as pltpu


def _rotary_kernel_packed(t_ref, inv_ref, out_ref):
    """Lane-dense path: f = 128 // dim positions packed per 128-lane row.

    t_ref:   (tile_rows, f)       f32  -- f consecutive positions per row
    inv_ref: (1, f * dim)         f32  -- [inv_freq|inv_freq] tiled f times
    out_ref: (tile_rows, f * dim) f32  -- f * dim == 128 (lane-dense)
    """
    t_blk = t_ref[...]
    rows, f = t_blk.shape
    dim = out_ref.shape[-1] // f
    # Expand each of the f position columns across its dim-wide lane window,
    # then one dense VPU multiply and one full-width (unmasked) store.
    parts = [jnp.broadcast_to(t_blk[:, g:g + 1], (rows, dim)) for g in range(f)]
    t_exp = jnp.concatenate(parts, axis=-1)            # (rows, f * dim)
    out_ref[...] = t_exp * inv_ref[...]


def _rotary_kernel_plain(t_ref, inv_ref, out_ref):
    """Fallback path (dim >= 128, or n not divisible by the packing factor).

    t_ref:   (tile_rows, 1)   f32
    inv_ref: (1, dim)         f32
    out_ref: (tile_rows, dim) f32
    """
    out_ref[...] = t_ref[...] * inv_ref[...]


def _round_up(x, m):
    return ((x + m - 1) // m) * m


def _pick_tile_rows(n_rows, row_bytes, target_block_bytes, min_steps):
    """Rows per output block: ~target_block_bytes, and >= min_steps grid steps."""
    by_bytes = max(8, (target_block_bytes // row_bytes) // 8 * 8)
    by_split = max(8, _round_up(-(-n_rows // min_steps), 8))
    tile = min(by_bytes, by_split)
    if tile >= n_rows:
        return n_rows            # tiny problem: one full block
    return tile


def rotary_embedding(t, inv_freq, *, target_block_bytes=2 * 1024 * 1024,
                     min_steps=4):
    """t: (n,) positions (any real/int dtype), inv_freq: (dim//2,) -> (n, dim) f32."""
    n = t.shape[0]
    half = inv_freq.shape[0]
    dim = 2 * half

    t32 = t.astype(jnp.float32)
    inv_cat = jnp.concatenate(
        [inv_freq.astype(jnp.float32), inv_freq.astype(jnp.float32)])   # (dim,)

    # Lane-dense packing factor: f consecutive positions per 128-lane row.
    f = 128 // dim if (0 < dim < 128 and 128 % dim == 0) else 1
    use_packed = f > 1 and n % f == 0

    if use_packed:
        n_rows, width = n // f, f * dim            # width == 128
        t_in = t32.reshape(n_rows, f)
        inv_in = jnp.tile(inv_cat, f).reshape(1, width)
        kernel = _rotary_kernel_packed
    else:
        n_rows, width = n, dim
        t_in = t32.reshape(n_rows, 1)
        inv_in = inv_cat.reshape(1, width)
        kernel = _rotary_kernel_plain

    tile_rows = _pick_tile_rows(n_rows, width * 4, target_block_bytes, min_steps)
    grid = (pl.cdiv(n_rows, tile_rows),)

    out = pl.pallas_call(
        kernel,
        out_shape=jax.ShapeDtypeStruct((n_rows, width), jnp.float32),
        grid=grid,
        in_specs=[
            pl.BlockSpec((tile_rows, t_in.shape[1]), lambda i: (i, 0)),
            pl.BlockSpec((1, width), lambda i: (0, 0)),
        ],
        out_specs=pl.BlockSpec((tile_rows, width), lambda i: (i, 0)),
        compiler_params=pltpu.CompilerParams(
            dimension_semantics=("parallel",),
        ),
    )(t_in, inv_in)

    # Row-major reshape back to the PyTorch (n, dim) layout; free under jit.
    return out.reshape(n, dim)


def make_rotary_embedding(dim, **kwargs):
    """Module-style factory: builds inv_freq once, returns a jitted apply(t)."""
    inv_freq = 1.0 / (10000.0 ** (jnp.arange(0, dim, 2, dtype=jnp.float32) / dim))

    @jax.jit
    def apply(t):
        return rotary_embedding(t, inv_freq, **kwargs)

    return apply


def _reference(t, inv_freq):
    freqs = t.astype(jnp.float32)[:, None] * inv_freq.astype(jnp.float32)[None, :]
    return jnp.concatenate([freqs, freqs], axis=-1)


if __name__ == "__main__":
    dim = 32   # rotary dim (must be even)
    seq = 8    # number of positions

    # Deterministic parameter init (matches the torch buffer exactly).
    inv_freq = 1.0 / (10000.0 ** (jnp.arange(0, dim, 2, dtype=jnp.float32) / dim))
    rope = make_rotary_embedding(dim)

    # Primary small test: seq=8, dim=32 (lane-dense packed path, single block).
    key = jax.random.PRNGKey(0)
    t = jax.random.uniform(key, (seq,), dtype=jnp.float32, minval=0.0,
                           maxval=float(seq))
    out = jax.block_until_ready(rope(t))
    ref = _reference(t, inv_freq)
    assert out.shape == (seq, dim), out.shape
    assert out.dtype == jnp.float32
    assert jnp.allclose(out, ref, atol=1e-6, rtol=1e-6)

    # Multi-block packed path: n=256 -> 64 packed rows -> 4 grid steps.
    t2 = jax.random.uniform(jax.random.PRNGKey(1), (256,), dtype=jnp.float32,
                            minval=0.0, maxval=256.0)
    out2 = jax.block_until_ready(rotary_embedding(t2, inv_freq))
    assert out2.shape == (256, dim)
    assert jnp.allclose(out2, _reference(t2, inv_freq), atol=1e-6, rtol=1e-6)

    # Fallback path (n % f != 0): unpacked, 2 blocks with a partial last block.
    t3 = jax.random.uniform(jax.random.PRNGKey(2), (10,), dtype=jnp.float32,
                            minval=0.0, maxval=10.0)
    out3 = jax.block_until_ready(rotary_embedding(t3, inv_freq))
    assert out3.shape == (10, dim)
    assert jnp.allclose(out3, _reference(t3, inv_freq), atol=1e-6, rtol=1e-6)

    # dim >= 128: output is already lane-dense, unpacked path, 2 grid steps.
    dim_big = 256
    inv_big = 1.0 / (10000.0 ** (jnp.arange(0, dim_big, 2, dtype=jnp.float32)
                                 / dim_big))
    t4 = jax.random.uniform(jax.random.PRNGKey(3), (16,), dtype=jnp.float32,
                            minval=0.0, maxval=16.0)
    out4 = jax.block_until_ready(rotary_embedding(t4, inv_big))
    assert out4.shape == (16, dim_big)
    assert jnp.allclose(out4, _reference(t4, inv_big), atol=1e-6, rtol=1e-6)

    print("KERNEL_OK")
</pallas_src>

<mosaic_0001>
module attributes {stable_mosaic.version = 11 : i64} {
  func.func @_rotary_kernel_packed(%arg0: i32, %arg1: memref<2x4xf32, #tpu.memory_space<vmem>>, %arg2: memref<1x128xf32, #tpu.memory_space<vmem>>, %arg3: memref<2x128xf32, #tpu.memory_space<vmem>>) attributes {dimension_semantics = [#tpu.dimension_semantics<parallel>], iteration_bounds = array<i64: 1>, scalar_prefetch = 0 : i64, scratch_operands = 0 : i64, tpu.core_type = #tpu.core_type<tc>, window_params = [{transform_indices = @transform_0, window_bounds = array<i64: 2, 4>}, {pipeline_mode = #tpu.pipeline_mode<synchronous>, transform_indices = @transform_1, window_bounds = array<i64: 1, 128>}, {transform_indices = @transform_2, window_bounds = array<i64: 2, 128>}]} {
    %c0 = arith.constant 0 : index
    %c0_0 = arith.constant 0 : index
    %0 = vector.load %arg1[%c0, %c0_0] : memref<2x4xf32, #tpu.memory_space<vmem>>, vector<2x4xf32>
    %1 = vector.extract_strided_slice %0 {offsets = [0, 0], sizes = [2, 1], strides = [1, 1]} : vector<2x4xf32> to vector<2x1xf32>
    %2 = vector.shape_cast %1 : vector<2x1xf32> to vector<2x1xf32>
    %3 = vector.broadcast %2 : vector<2x1xf32> to vector<2x32xf32>
    %4 = vector.extract_strided_slice %0 {offsets = [0, 1], sizes = [2, 1], strides = [1, 1]} : vector<2x4xf32> to vector<2x1xf32>
    %5 = vector.shape_cast %4 : vector<2x1xf32> to vector<2x1xf32>
    %6 = vector.broadcast %5 : vector<2x1xf32> to vector<2x32xf32>
    %7 = vector.extract_strided_slice %0 {offsets = [0, 2], sizes = [2, 1], strides = [1, 1]} : vector<2x4xf32> to vector<2x1xf32>
    %8 = vector.shape_cast %7 : vector<2x1xf32> to vector<2x1xf32>
    %9 = vector.broadcast %8 : vector<2x1xf32> to vector<2x32xf32>
    %10 = vector.extract_strided_slice %0 {offsets = [0, 3], sizes = [2, 1], strides = [1, 1]} : vector<2x4xf32> to vector<2x1xf32>
    %11 = vector.shape_cast %10 : vector<2x1xf32> to vector<2x1xf32>
    %12 = vector.broadcast %11 : vector<2x1xf32> to vector<2x32xf32>
    %13 = tpu.concatenate %3, %6, %9, %12 in 1 : vector<2x32xf32>, vector<2x32xf32>, vector<2x32xf32>, vector<2x32xf32> -> vector<2x128xf32>
    %c0_1 = arith.constant 0 : index
    %c0_2 = arith.constant 0 : index
    %14 = vector.load %arg2[%c0_1, %c0_2] : memref<1x128xf32, #tpu.memory_space<vmem>>, vector<1x128xf32>
    %15 = vector.broadcast %14 : vector<1x128xf32> to vector<2x128xf32>
    %16 = arith.mulf %13, %15 : vector<2x128xf32>
    %c0_3 = arith.constant 0 : index
    %c0_4 = arith.constant 0 : index
    %17 = vector.load %arg3[%c0_3, %c0_4] : memref<2x128xf32, #tpu.memory_space<vmem>>, vector<2x128xf32>
    tpu.vector_store %arg3[%c0_3, %c0_4], %16 {strides = array<i32>} : memref<2x128xf32, #tpu.memory_space<vmem>>, vector<2x128xf32>,
    return
  }
  func.func @transform_0(%arg0: i32) -> (i32, i32) {
    %c0_i32 = arith.constant 0 : i32
    %c0_i32_0 = arith.constant 0 : i32
    return %arg0, %c0_i32 : i32, i32
  }
  func.func @transform_1(%arg0: i32) -> (i32, i32) {
    %c0_i32 = arith.constant 0 : i32
    %c0_i32_0 = arith.constant 0 : i32
    %c0_i32_1 = arith.constant 0 : i32
    return %c0_i32, %c0_i32_0 : i32, i32
  }
  func.func @transform_2(%arg0: i32) -> (i32, i32) {
    %c0_i32 = arith.constant 0 : i32
    %c0_i32_0 = arith.constant 0 : i32
    return %arg0, %c0_i32 : i32, i32
  }
}

</mosaic_0001>

<llo_original>
// kernel: tile.7
$region0: #{tile.7}
  %s0 = inlined_call_operand.vmem [shape: f32[4,32], index: 0, kind: input, shape index: {}]
  %s1 = inlined_call_operand.vmem [shape: f32[1,128], index: 1, kind: output, shape index: {}]
  $region1: #{tile.7} parent=0
    #allocation0 [shape = 'u8[4096]{0}', space=vmem, size = 0x1000, scoped, tag = 'scoped mem for output reshape']
    #allocation1 [shape = 'u8[4096]{0}', space=vmem, size = 0x1000, scoped, tag = 'scoped mem for input reshape']
    %s3 = sshll.u32 1, 4
    %s4 = ssub.s32 %s3, 1
    %v5 = vld [vmem:[%s0] sm:%s4]
    %6 = vst [vmem:[#allocation1] sm:%s4] %v5
    %v7 = vld [vmem:[#allocation1] sm:$0x1]
    %vm8 = vcmask 261120
    %9 = vst.msk [vmem:[#allocation0] sm:$0x1] %vm8, %v7
    %s10 = scalar_lea.vmem [#allocation1], 3
    %v11 = vld [vmem:[%s10] sm:$0x1]
    %12 = vrot.lane.b32.xlu0 %v11, 96
    %v13 = vpop.permute.xlu0 %12
    %vm14 = vcmask 1048320
    %15 = vst.msk [vmem:[#allocation0] sm:$0x1] %vm14, %v13
    %s16 = scalar_lea.vmem [#allocation1], 2
    %v17 = vld [vmem:[%s16] sm:$0x1]
    %18 = vrot.lane.b32.xlu0 %v17, 64
    %v19 = vpop.permute.xlu0 %18
    %vm20 = vcmask 785920
    %21 = vst.msk [vmem:[#allocation0] sm:$0x1] %vm20, %v19
    %s22 = scalar_lea.vmem [#allocation1], 1
    %v23 = vld [vmem:[%s22] sm:$0x1]
    %24 = vrot.lane.b32.xlu0 %v23, 32
    %v25 = vpop.permute.xlu0 %24
    %vm26 = vcmask 523520
    %27 = vst.msk [vmem:[#allocation0] sm:$0x1] %vm26, %v25
    %s29 = sshll.u32 1, 1
    %s30 = ssub.s32 %s29, 1
    %v32 = vld [vmem:[#allocation0] sm:%s30]
    %s33 = sshll.u32 1, 1
    %s34 = ssub.s32 %s33, 1
    %35 = vst [vmem:[%s1] sm:%s34] %v32

// kernel: tile.6
$region0: #{tile.6}
  #allocation0 [shape = 's32[1]{0}', space=sflag, size = 0x4, scoped, tag = 'scoped memory for tile.6']
  %s0 = inlined_call_operand.vmem [shape: f32[32], index: 0, kind: input, shape index: {}]
  %s1 = inlined_call_operand.vmem [shape: f32[4,32], index: 1, kind: output, shape index: {}]
  // Predicated region
  $region2: #{tile.6} parent=0 // pred_check
    _
  $region3: #{tile.6} parent=0 // pred_check_branch
    %3 = sbr.rel (0) target = $region5
  $region4: #{tile.6} parent=0 // pred_region
    _
  $region5: #{tile.6} parent=0 // pred_fallthru
    _
  %v4 = vld [vmem:[%s0] ss:$0 sm:$0xff]
  %5 = vst [vmem:[%s1] sm:$0xf] %v4

// kernel: apply.1
$region0: #{apply.1}
  #allocation0 [shape = 'u32[]', space=smem, size = 0x4, offset = 0x4, fixed_abs, tag = 'smem constant byte address 0x4 - core index']
  #allocation1 [shape = 'u32[144,128]{1,0:T(1,128)}', space=vmem, size = 0x12000, scoped, tag = 'internal scratch']
  %s0 = inlined_call_operand.vmem [shape: f32[2,4], index: 0, kind: input, shape index: {}]
  %s1 = inlined_call_operand.vmem [shape: f32[1,128], index: 1, kind: input, shape index: {}]
  %s2 = inlined_call_operand.vmem [shape: f32[2,128], index: 2, kind: output, shape index: {}]
  %s3 = sld [smem:[#allocation0]]
  $region18: #{apply.1} parent=0
    _
  %s5 = ssub.s32 1, %s3
  %s6 = scalar_select 0, %s5, %s3
  // Predicated region
  $region2: #{apply.1} parent=0 // pred_check
    _
  $region3: #{apply.1} parent=0 // pred_check_branch
    %8 = sbr.rel (0) target = $region5
  $region4: #{apply.1} parent=0 // pred_region
    _
  $region5: #{apply.1} parent=0 // pred_fallthru
    _
  // Predicated region
  $region6: #{apply.1} parent=0 // pred_check
    _
  $region7: #{apply.1} parent=0 // pred_check_branch
    %10 = sbr.rel (0) target = $region9
  $region8: #{apply.1} parent=0 // pred_region
    _
  $region9: #{apply.1} parent=0 // pred_fallthru
    _
  %v11 = vld [vmem:[%s0] sm:$0x3]
  %13 = vset.pattern.permute.xlu0 0
  %14 = vperm.xlu0 %13, %v11
  %v15 = vpop.permute.xlu0 %14
  %17 = vset.pattern.permute.xlu0 1
  %18 = vperm.xlu0 %17, %v11
  %v19 = vpop.permute.xlu0 %18
  %21 = vset.pattern.permute.xlu0 2
  %22 = vperm.xlu0 %21, %v11
  %v23 = vpop.permute.xlu0 %22
  %25 = vset.pattern.permute.xlu0 3
  %26 = vperm.xlu0 %25, %v11
  %v27 = vpop.permute.xlu0 %26
  %vm29 = vcmask 261120
  %v30 = vsel %vm29, %v15, %v19
  %vm31 = vcmask 523264
  %v32 = vsel %vm31, %v30, %v23
  %vm33 = vcmask 785408
  %v34 = vsel %vm33, %v32, %v27
  %v35 = vld [vmem:[%s1] sm:$0x1]
  %v37 = vlaneseq
  %v38 = vshrl.u32 %v37, 7
  %v39 = vsub.s32 0, %v38
  %v40 = vrot.slane %v35, %v39
  %v42 = vmul.f32 %v34, %v40
  %43 = vst [vmem:[%s2] sm:$0x3] %v42
  // Predicated region
  $region10: #{apply.1} parent=0 // pred_check
    _
  $region11: #{apply.1} parent=0 // pred_check_branch
    %45 = sbr.rel (0) target = $region13
  $region12: #{apply.1} parent=0 // pred_region
    _
  $region13: #{apply.1} parent=0 // pred_fallthru
    _
  // Predicated region
  $region14: #{apply.1} parent=0 // pred_check
    _
  $region15: #{apply.1} parent=0 // pred_check_branch
    %47 = sbr.rel (0) target = $region17
  $region16: #{apply.1} parent=0 // pred_region
    _
  $region17: #{apply.1} parent=0 // pred_fallthru
    _

</llo_original>
